<compile_context>
chip_gen: v6e
topology: v6e:2x2x1
jax: 0.10.0
libtpu: 0.0.40
codegen_flags: <defaults>
</compile_context>

<pallas_src>
import jax
import jax.numpy as jnp
from jax.experimental import pallas as pl
from jax.experimental.pallas import tpu as pltpu

_LANE = 128


def _norm_distance_kernel(src_pos_ref, dst_pos_ref, dist_ref):
    # src_pos_ref / dst_pos_ref : (D, TILE_ROWS, 128)   dist_ref : (TILE_ROWS, 128)
    diff = src_pos_ref[...] - dst_pos_ref[...]          # (D, TR, 128)  VPU
    d2 = jnp.sum(diff * diff, axis=0)                   # (TR, 128)     D-1 VPU adds
    dist_ref[...] = 1.0 / (d2 + 1e-6)                   # dense (8,128)-tiled store


def norm_distance_feature(src_pos, dst_pos, src_interp, *, tile_rows=4096):
    """Pallas implementation of NormDistanceFeature.forward.

    Args:
      src_pos:    (E, D) float32  -- edges.src['pos']
      dst_pos:    (E, D) float32  -- edges.dst['pos']
      src_interp: (E, F) float32  -- edges.src['interp']
    Returns:
      dict with:
        'interpolated_feature': (E, F) float32  (pass-through, no kernel copy)
        'distance':             (E,)   float32
    """
    E, D = src_pos.shape
    assert dst_pos.shape == (E, D)

    # Round E up to a multiple of 128 so the edge axis reshapes onto lanes.
    rows = (E + _LANE - 1) // _LANE
    e_pad = rows * _LANE

    def relayout(p):
        # (E, D) -> (D, rows, 128).  pad + transpose + reshape fuse into one
        # XLA relayout pass (single read + single write of the array).
        p = p.astype(jnp.float32)
        if e_pad != E:
            p = jnp.pad(p, ((0, e_pad - E), (0, 0)))   # zero tail -> finite 1e6, sliced off
        return jnp.transpose(p).reshape(D, rows, _LANE)

    src_t = relayout(src_pos)
    dst_t = relayout(dst_pos)

    tr = min(tile_rows, rows)                 # full dim if small; multiple of 8 otherwise
    n_tiles = pl.cdiv(rows, tr)               # ragged final block masked by Pallas

    dist_2d = pl.pallas_call(
        _norm_distance_kernel,
        out_shape=jax.ShapeDtypeStruct((rows, _LANE), jnp.float32),
        grid_spec=pltpu.PrefetchScalarGridSpec(
            num_scalar_prefetch=0,
            grid=(n_tiles,),
            in_specs=[
                pl.BlockSpec((D, tr, _LANE), lambda i: (0, i, 0)),   # src_pos
                pl.BlockSpec((D, tr, _LANE), lambda i: (0, i, 0)),   # dst_pos
            ],
            out_specs=pl.BlockSpec((tr, _LANE), lambda i: (i, 0)),    # distance
        ),
        compiler_params=pltpu.CompilerParams(
            dimension_semantics=("parallel",),        # megacore split on v7x
            vmem_limit_bytes=40 << 20,                # ~28 MiB used; < 64 MiB v7x physical
        ),
    )(src_t, dst_t)

    # Row-major contiguous reshape back to (E,) -- metadata only, plus a slice.
    distance = dist_2d.reshape(-1)[:E]

    # Pure pass-through: do NOT move src_interp through the kernel.
    return {"interpolated_feature": src_interp, "distance": distance}


if __name__ == "__main__":
    # Small deterministic example: E edges (not a multiple of 128, to exercise
    # the ragged tail), D=3 coordinates, F=32 features.
    E, D, F = 300, 3, 32
    key = jax.random.PRNGKey(0)
    k1, k2, k3 = jax.random.split(key, 3)
    src_pos = jax.random.normal(k1, (E, D), dtype=jnp.float32)
    dst_pos = jax.random.normal(k2, (E, D), dtype=jnp.float32)
    src_interp = jax.random.normal(k3, (E, F), dtype=jnp.float32)

    out = norm_distance_feature(src_pos, dst_pos, src_interp)
    jax.block_until_ready(out)

    # Reference check in plain JAX (same semantics as the PyTorch module).
    d2_ref = jnp.sum((src_pos - dst_pos) ** 2, axis=-1)
    dist_ref = 1.0 / (d2_ref + 1e-6)
    assert out["distance"].shape == (E,)
    assert jnp.allclose(out["distance"], dist_ref, rtol=1e-5, atol=1e-5)
    assert jnp.allclose(out["interpolated_feature"], src_interp)

    print("KERNEL_OK")
</pallas_src>

<mosaic_0001>
module attributes {stable_mosaic.version = 11 : i64} {
  func.func @_norm_distance_kernel(%arg0: i32, %arg1: memref<3x3x128xf32, #tpu.memory_space<vmem>>, %arg2: memref<3x3x128xf32, #tpu.memory_space<vmem>>, %arg3: memref<3x128xf32, #tpu.memory_space<vmem>>) attributes {dimension_semantics = [#tpu.dimension_semantics<parallel>], iteration_bounds = array<i64: 1>, scalar_prefetch = 0 : i64, scratch_operands = 0 : i64, tpu.core_type = #tpu.core_type<tc>, window_params = [{transform_indices = @transform_0, window_bounds = array<i64: 3, 3, 128>}, {transform_indices = @transform_1, window_bounds = array<i64: 3, 3, 128>}, {transform_indices = @transform_2, window_bounds = array<i64: 3, 128>}]} {
    %c0 = arith.constant 0 : index
    %c0_0 = arith.constant 0 : index
    %c0_1 = arith.constant 0 : index
    %0 = vector.load %arg1[%c0, %c0_0, %c0_1] : memref<3x3x128xf32, #tpu.memory_space<vmem>>, vector<3x3x128xf32>
    %c0_2 = arith.constant 0 : index
    %c0_3 = arith.constant 0 : index
    %c0_4 = arith.constant 0 : index
    %1 = vector.load %arg2[%c0_2, %c0_3, %c0_4] : memref<3x3x128xf32, #tpu.memory_space<vmem>>, vector<3x3x128xf32>
    %2 = arith.subf %0, %1 : vector<3x3x128xf32>
    %3 = arith.mulf %2, %2 : vector<3x3x128xf32>
    %cst = arith.constant dense<0.000000e+00> : vector<3x128xf32>
    %4 = vector.multi_reduction <add>, %3, %cst [0] : vector<3x3x128xf32> to vector<3x128xf32>
    %cst_5 = arith.constant 9.99999997E-7 : f32
    %5 = vector.broadcast %cst_5 : f32 to vector<3x128xf32>
    %6 = arith.addf %4, %5 : vector<3x128xf32>
    %cst_6 = arith.constant 1.000000e+00 : f32
    %7 = vector.broadcast %cst_6 : f32 to vector<3x128xf32>
    %8 = arith.divf %7, %6 : vector<3x128xf32>
    %c0_7 = arith.constant 0 : index
    %c0_8 = arith.constant 0 : index
    %9 = vector.load %arg3[%c0_7, %c0_8] : memref<3x128xf32, #tpu.memory_space<vmem>>, vector<3x128xf32>
    tpu.vector_store %arg3[%c0_7, %c0_8], %8 {strides = array<i32>} : memref<3x128xf32, #tpu.memory_space<vmem>>, vector<3x128xf32>,
    return
  }
  func.func @transform_0(%arg0: i32) -> (i32, i32, i32) {
    %c0_i32 = arith.constant 0 : i32
    %c0_i32_0 = arith.constant 0 : i32
    %c0_i32_1 = arith.constant 0 : i32
    return %c0_i32, %arg0, %c0_i32_0 : i32, i32, i32
  }
  func.func @transform_1(%arg0: i32) -> (i32, i32, i32) {
    %c0_i32 = arith.constant 0 : i32
    %c0_i32_0 = arith.constant 0 : i32
    %c0_i32_1 = arith.constant 0 : i32
    return %c0_i32, %arg0, %c0_i32_0 : i32, i32, i32
  }
  func.func @transform_2(%arg0: i32) -> (i32, i32) {
    %c0_i32 = arith.constant 0 : i32
    %c0_i32_0 = arith.constant 0 : i32
    return %arg0, %c0_i32 : i32, i32
  }
}

</mosaic_0001>

<llo_original>
// kernel: tpu_custom_call.1
$region0: #{tpu_custom_call.1}
  #allocation0 [shape = 'u32[]', space=smem, size = 0x4, offset = 0x4, fixed_abs, tag = 'smem constant byte address 0x4 - core index']
  #allocation1 [shape = 'u32[144,128]{1,0:T(1,128)}', space=vmem, size = 0x12000, scoped, tag = 'internal scratch']
  %s0 = inlined_call_operand.hbm [shape: f32[3,3,128], index: 0, kind: input, shape index: {}]
  %s1 = inlined_call_operand.hbm [shape: f32[3,3,128], index: 1, kind: input, shape index: {}]
  %s2 = inlined_call_operand.hbm [shape: f32[3,128], index: 2, kind: output, shape index: {}]
  %s3 = sld [smem:[#allocation0]]
  $region26: #{tpu_custom_call.1} parent=0
    _
  %s5 = ssub.s32 1, %s3
  %s6 = scalar_select 0, %s5, %s3
  $region1: #{tpu_custom_call.1} parent=0
    #allocation2 [shape = 'u8[6144]{0}', space=vmem, size = 0x1800, scoped, tag = 'input window, operand 0, single buffered']
    #allocation3 [shape = 's32[1]{0}', space=sflag, size = 0x4, scoped, tag = 'scoped memory for tpu_custom_call.1']
    #allocation4 [shape = 's32[1]{0}', space=sflag, size = 0x4, scoped, tag = 'scoped memory for tpu_custom_call.1']
    #allocation5 [shape = 'u8[6144]{0}', space=vmem, size = 0x1800, scoped, tag = 'input window, operand 1, single buffered']
    #allocation6 [shape = 's32[1]{0}', space=sflag, size = 0x4, scoped, tag = 'scoped memory for tpu_custom_call.1']
    #allocation7 [shape = 'u8[2048]{0}', space=vmem, size = 0x800, scoped, tag = 'output window, operand 0, single buffered']
    %7 = vsyncpa [#allocation3], 0
    %8 = vsyncpa [#allocation6], 0
    %9 = vsyncpa [#allocation4], 0
    // Predicated region
    $region2: #{tpu_custom_call.1} parent=1 // pred_check
      _
    $region3: #{tpu_custom_call.1} parent=1 // pred_check_branch
      %11 = sbr.rel (0) target = $region5
    $region4: #{tpu_custom_call.1} parent=1 // pred_region
      %s13 = ssub.s32 192, 192
      %14 = vsyncadd [#allocation3], %s13
      %s15 = sshll.u32 [#allocation2], 4
      %s16 = int_to_ptr.vmem [resolvable:$true] %s15
      %21 = dma.hbm_to_vmem [thread:$0]  %s0, 192, %s16, [#allocation3], 64, 64, 4
    $region5: #{tpu_custom_call.1} parent=1 // pred_fallthru
      _
    // Predicated region
    $region6: #{tpu_custom_call.1} parent=1 // pred_check
      _
    $region7: #{tpu_custom_call.1} parent=1 // pred_check_branch
      %23 = sbr.rel (0) target = $region9
    $region8: #{tpu_custom_call.1} parent=1 // pred_region
      %s25 = ssub.s32 192, 192
      %26 = vsyncadd [#allocation6], %s25
      %s27 = sshll.u32 [#allocation5], 4
      %s28 = int_to_ptr.vmem [resolvable:$true] %s27
      %33 = dma.hbm_to_vmem [thread:$0]  %s1, 192, %s28, [#allocation6], 64, 64, 4
    $region9: #{tpu_custom_call.1} parent=1 // pred_fallthru
      _
    // Predicated region
    $region10: #{tpu_custom_call.1} parent=1 // pred_check
      _
    $region11: #{tpu_custom_call.1} parent=1 // pred_check_branch
      %35 = sbr.rel (0) target = $region13
    $region12: #{tpu_custom_call.1} parent=1 // pred_region
      %36 = dma.done [#allocation3], 192
    $region13: #{tpu_custom_call.1} parent=1 // pred_fallthru
      _
    // Predicated region
    $region14: #{tpu_custom_call.1} parent=1 // pred_check
      _
    $region15: #{tpu_custom_call.1} parent=1 // pred_check_branch
      %38 = sbr.rel (0) target = $region17
    $region16: #{tpu_custom_call.1} parent=1 // pred_region
      %39 = dma.done [#allocation6], 192
    $region17: #{tpu_custom_call.1} parent=1 // pred_fallthru
      _
    %v40 = vld [vmem:[#allocation2] sm:$0x7]
    %v41 = vld [vmem:[#allocation2 + $0x4] sm:$0x7]
    %v42 = vld [vmem:[#allocation2 + $0x8] sm:$0x7]
    %v43 = vld [vmem:[#allocation5] sm:$0x7]
    %v44 = vld [vmem:[#allocation5 + $0x4] sm:$0x7]
    %v45 = vld [vmem:[#allocation5 + $0x8] sm:$0x7]
    %v46 = vsub.f32 %v40, %v43
    %v47 = vsub.f32 %v41, %v44
    %v48 = vsub.f32 %v42, %v45
    %v49 = vmul.f32 %v46, %v46
    %v50 = vmul.f32 %v47, %v47
    %v51 = vmul.f32 %v48, %v48
    %vm52 = vcmask 1042432
    %v53 = vsel %vm52, %v49, 0.0
    %v54 = vsel %vm52, %v50, 0.0
    %v55 = vadd.f32 %v53, %v54
    %v56 = vsel %vm52, %v51, 0.0
    %v57 = vadd.f32 %v55, %v56
    %v58 = vadd.f32 %v57, 1e-06
    %v59 = vrcp.pop %v58
    %v60 = vmul.f32 1.0, %v59
    %61 = vst [vmem:[#allocation7] sm:$0x7] %v60
    // Predicated region
    $region18: #{tpu_custom_call.1} parent=1 // pred_check
      _
    $region19: #{tpu_custom_call.1} parent=1 // pred_check_branch
      %63 = sbr.rel (0) target = $region21
    $region20: #{tpu_custom_call.1} parent=1 // pred_region
      %s65 = ssub.s32 64, 64
      %66 = vsyncadd [#allocation4], %s65
      %s68 = sshll.u32 [#allocation7], 4
      %s69 = int_to_ptr.vmem [resolvable:$true] %s68
      %71 = dma.vmem_to_hbm [thread:$0]  %s69, 64, %s2, [#allocation4]
    $region21: #{tpu_custom_call.1} parent=1 // pred_fallthru
      _
    // Predicated region
    $region22: #{tpu_custom_call.1} parent=1 // pred_check
      _
    $region23: #{tpu_custom_call.1} parent=1 // pred_check_branch
      %73 = sbr.rel (0) target = $region25
    $region24: #{tpu_custom_call.1} parent=1 // pred_region
      %74 = dma.done [#allocation4], 64
    $region25: #{tpu_custom_call.1} parent=1 // pred_fallthru
      _
    %75 = vsyncpa [#allocation3], 1
    %76 = vsyncpa [#allocation6], 1
    %77 = vsyncpa [#allocation4], 1

</llo_original>
